<compile_context>
chip_gen: v7x
topology: tpu7x:2x2x1
jax: 0.10.0
libtpu: 0.0.40
codegen_flags: <defaults>
</compile_context>

<pallas_src>
import jax
import jax.numpy as jnp
from jax.experimental import pallas as pl
from jax.experimental.pallas import tpu as pltpu


def _disc_kernel(x_ref, w_ref, b_ref, o_ref):
    # x_ref: (C, T) VMEM (f32 or bf16), w_ref: (1, C) VMEM (same dtype as x),
    # b_ref: (1,) SMEM f32, o_ref: (1, T) VMEM f32.
    acc = jnp.dot(w_ref[...], x_ref[...], preferred_element_type=jnp.float32)  # (1, T) f32
    o_ref[...] = jax.nn.sigmoid(acc + b_ref[0]).astype(o_ref.dtype)


def discriminator_forward(x, weight, bias, *, tile_hw=8192):
    """1x1 Conv2d(C->1) + Sigmoid + squeeze.

    x: (N, C, H, W) float32 or bfloat16 (pass bf16 from the producer for ~2x
       less HBM traffic; accumulation is always f32).
    weight: (1, C, 1, 1), bias: (1,).
    """
    N, C, H, W = x.shape
    HW = H * W

    # Free reshapes only — no transpose, no extra HBM pass over the activations.
    x3 = x.reshape(N, C, HW)                               # (N, C, HW)
    w_row = weight.reshape(1, C).astype(x.dtype)           # (1, C), matches x dtype for the MXU
    b = bias.reshape(1).astype(jnp.float32)                # (1,) -> SMEM

    # Lane tile: as wide as possible, 128-aligned, or the full spatial extent when small.
    t = min(tile_hw, HW)
    if t < HW:
        t = max(128, (t // 128) * 128)
    num_tiles = pl.cdiv(HW, t)

    # v7x megacore: guarantee >=2 parallel grid steps when the shape allows it,
    # so both TensorCores pull from HBM. No effect on v5e/v6e (1 TC).
    if N * num_tiles < 2 and HW >= 256:
        half = -(-HW // 2)
        t = ((half + 127) // 128) * 128
        num_tiles = pl.cdiv(HW, t)

    grid = (N, num_tiles)

    out3 = pl.pallas_call(
        _disc_kernel,
        out_shape=jax.ShapeDtypeStruct((N, 1, HW), jnp.float32),
        grid_spec=pltpu.PrefetchScalarGridSpec(
            num_scalar_prefetch=0,
            grid=grid,
            in_specs=[
                # x tile: batch dim squeezed, kernel sees (C, t)
                pl.BlockSpec((pl.Squeezed(), C, t), lambda n, j: (n, 0, j)),
                # conv weight: constant block index -> stays resident in VMEM
                pl.BlockSpec((1, C), lambda n, j: (0, 0)),
                # bias: whole (1,) array in SMEM, read as a scalar
                pl.BlockSpec(memory_space=pltpu.MemorySpace.SMEM),
            ],
            out_specs=pl.BlockSpec((pl.Squeezed(), 1, t), lambda n, j: (n, 0, j)),
        ),
        compiler_params=pltpu.CompilerParams(
            dimension_semantics=("parallel", "parallel"),
            # 32 MiB scoped VMEM: raises v5e's 16 MiB default, matches v6e/v7x
            # defaults, and leaves headroom on v7x's 64 MiB physical per-TC VMEM.
            vmem_limit_bytes=32 * 1024 * 1024,
        ),
    )(x3, w_row, b)

    # Back to the NCHW conv-output shape, then emulate torch's .squeeze().
    out4d = out3.reshape(N, 1, H, W)
    return jnp.squeeze(out4d)


def _reference_forward(x, weight, bias):
    # Pure-JAX f32 reference for the 1x1 conv + sigmoid + squeeze.
    xf = x.astype(jnp.float32)
    wf = weight.reshape(1, -1).astype(jnp.float32)         # (1, C)
    y = jnp.einsum("oc,nchw->nohw", wf, xf) + bias.astype(jnp.float32).reshape(1, 1, 1, 1)
    return jnp.squeeze(jax.nn.sigmoid(y))


if __name__ == "__main__":
    key = jax.random.PRNGKey(0)
    k_x, k_w, k_b, k_x2 = jax.random.split(key, 4)

    C = 256  # fixed by the module: Conv2d(256, 1, k=1)
    # Deterministic parameter init (mimics Conv2d default uniform bound 1/sqrt(fan_in)).
    bound = 1.0 / jnp.sqrt(jnp.float32(C))
    weight = jax.random.uniform(k_w, (1, C, 1, 1), jnp.float32, -bound, bound)
    bias = jax.random.uniform(k_b, (1,), jnp.float32, -bound, bound)

    # --- Test 1: f32 path, small NCHW input -------------------------------
    N, H, W = 2, 16, 16
    x = jax.random.normal(k_x, (N, C, H, W), dtype=jnp.float32)
    out = jax.block_until_ready(discriminator_forward(x, weight, bias))
    ref = _reference_forward(x, weight, bias)
    assert out.shape == ref.shape == (N, H, W), (out.shape, ref.shape)
    assert jnp.allclose(out, ref, atol=1e-5, rtol=1e-5)

    # --- Test 2: bf16-activation path (half the HBM read traffic) ---------
    x_bf16 = x.astype(jnp.bfloat16)
    out_bf = jax.block_until_ready(discriminator_forward(x_bf16, weight, bias))
    ref_bf = _reference_forward(x_bf16, weight.astype(jnp.bfloat16), bias)
    assert out_bf.shape == (N, H, W)
    assert out_bf.dtype == jnp.float32
    assert jnp.allclose(out_bf, ref_bf, atol=2e-3, rtol=2e-3)

    # --- Test 3: partial last tile + >=2-step split (N=1, HW=400, HW%128!=0)
    N2, H2, W2 = 1, 20, 20
    x2 = jax.random.normal(k_x2, (N2, C, H2, W2), dtype=jnp.float32)
    out2 = jax.block_until_ready(discriminator_forward(x2, weight, bias))
    ref2 = _reference_forward(x2, weight, bias)
    assert out2.shape == ref2.shape == (H2, W2), (out2.shape, ref2.shape)  # N==1 squeezed, like torch
    assert jnp.allclose(out2, ref2, atol=1e-5, rtol=1e-5)

    print("KERNEL_OK")
</pallas_src>

<mosaic_0001>
module attributes {stable_mosaic.version = 11 : i64} {
  func.func @_disc_kernel(%arg0: i32, %arg1: i32, %arg2: memref<1x256x256xf32, #tpu.memory_space<vmem>>, %arg3: memref<1x256xf32, #tpu.memory_space<vmem>>, %arg4: memref<1xf32, #tpu.memory_space<smem>>, %arg5: memref<1x1x256xf32, #tpu.memory_space<vmem>>) attributes {dimension_semantics = [#tpu.dimension_semantics<parallel>, #tpu.dimension_semantics<parallel>], iteration_bounds = array<i64: 2, 1>, scalar_prefetch = 0 : i64, scratch_operands = 0 : i64, tpu.core_type = #tpu.core_type<tc>, window_params = [{transform_indices = @transform_0, window_bounds = array<i64: 1, 256, 256>}, {pipeline_mode = #tpu.pipeline_mode<synchronous>, transform_indices = @transform_1, window_bounds = array<i64: 1, 256>}, {transform_indices = @transform_2, window_bounds = array<i64: 1>}, {transform_indices = @transform_3, window_bounds = array<i64: 1, 1, 256>}]} {
    %c0 = arith.constant 0 : index
    %c0_0 = arith.constant 0 : index
    %0 = vector.load %arg3[%c0, %c0_0] : memref<1x256xf32, #tpu.memory_space<vmem>>, vector<1x256xf32>
    %c0_1 = arith.constant 0 : index
    %c0_2 = arith.constant 0 : index
    %c0_3 = arith.constant 0 : index
    %1 = vector.load %arg2[%c0_1, %c0_2, %c0_3] : memref<1x256x256xf32, #tpu.memory_space<vmem>>, vector<1x256x256xf32>
    %2 = vector.shape_cast %1 : vector<1x256x256xf32> to vector<256x256xf32>
    %cst = arith.constant dense<0.000000e+00> : vector<1x256xf32>
    %3 = tpu.matmul %0, %2, %cst {dimension_numbers = #tpu.dot_dimension_numbers<[1], [0], [0], [1], [0, 0, 1, 1], [], []>} : vector<1x256xf32>, vector<256x256xf32>, vector<1x256xf32> -> vector<1x256xf32>
    %c0_4 = arith.constant 0 : index
    %4 = memref.load %arg4[%c0_4] : memref<1xf32, #tpu.memory_space<smem>>
    %5 = vector.broadcast %4 : f32 to vector<1x256xf32>
    %6 = arith.addf %3, %5 : vector<1x256xf32>
    %7 = arith.negf %6 : vector<1x256xf32>
    %8 = math.exp %7 : vector<1x256xf32>
    %cst_5 = arith.constant 1.000000e+00 : f32
    %9 = vector.broadcast %cst_5 : f32 to vector<1x256xf32>
    %10 = arith.addf %9, %8 : vector<1x256xf32>
    %11 = arith.divf %9, %10 : vector<1x256xf32>
    %c0_6 = arith.constant 0 : index
    %c0_7 = arith.constant 0 : index
    %c0_8 = arith.constant 0 : index
    %12 = vector.load %arg5[%c0_6, %c0_7, %c0_8] : memref<1x1x256xf32, #tpu.memory_space<vmem>>, vector<1x1x256xf32>
    %13 = vector.shape_cast %12 : vector<1x1x256xf32> to vector<1x256xf32>
    %14 = vector.shape_cast %11 : vector<1x256xf32> to vector<1x1x256xf32>
    tpu.vector_store %arg5[%c0_6, %c0_7, %c0_8], %14 {strides = array<i32>} : memref<1x1x256xf32, #tpu.memory_space<vmem>>, vector<1x1x256xf32>,
    return
  }
  func.func @transform_0(%arg0: i32, %arg1: i32) -> (i32, i32, i32) {
    %c0_i32 = arith.constant 0 : i32
    %c0_i32_0 = arith.constant 0 : i32
    return %arg0, %c0_i32, %arg1 : i32, i32, i32
  }
  func.func @transform_1(%arg0: i32, %arg1: i32) -> (i32, i32) {
    %c0_i32 = arith.constant 0 : i32
    %c0_i32_0 = arith.constant 0 : i32
    %c0_i32_1 = arith.constant 0 : i32
    return %c0_i32, %c0_i32_0 : i32, i32
  }
  func.func @transform_2(%arg0: i32, %arg1: i32) -> i32 {
    %c0_i32 = arith.constant 0 : i32
    %c0_i32_0 = arith.constant 0 : i32
    return %c0_i32 : i32
  }
  func.func @transform_3(%arg0: i32, %arg1: i32) -> (i32, i32, i32) {
    %c0_i32 = arith.constant 0 : i32
    %c0_i32_0 = arith.constant 0 : i32
    return %arg0, %c0_i32, %arg1 : i32, i32, i32
  }
}

</mosaic_0001>

<llo_original>
// kernel: tpu_custom_call.1
$region0: #{tpu_custom_call.1}
  #allocation0 [shape = 'u32[]', space=smem, size = 0x4, offset = 0x4, fixed_abs, tag = 'smem constant byte address 0x4 - core index']
  #allocation1 [shape = 'u32[144,128]{1,0:T(1,128)}', space=vmem, size = 0x12000, scoped, tag = 'internal scratch']
  #allocation2 [shape = 'f32[1]{0:T(128)S(6)}', space=smem, size = 0x200, scoped, tag = 'scoped memory for tpu_custom_call.1']
  %s0 = inlined_call_operand.hbm [shape: f32[2,256,256], index: 0, kind: input, shape index: {}]
  %s1 = inlined_call_operand.vmem [shape: f32[1,256], index: 1, kind: input, shape index: {}]
  %s2 = inlined_call_operand.<no memory space> [shape: f32[1], index: 2, kind: input, shape index: {}]
  %s3 = inlined_call_operand.hbm [shape: f32[2,1,256], index: 3, kind: output, shape index: {}]
  %s4 = sld [smem:[#allocation0]]
  $region49: #{tpu_custom_call.1} parent=0
    _
  %s6 = ssub.s32 1, %s4
  %s7 = scalar_select 0, %s6, %s4
  %8 = sst [smem:[#allocation2]] %s2
  $region1: #{tpu_custom_call.1} parent=0
    #allocation3 [shape = 'u8[524288]{0}', space=vmem, size = 0x80000, scoped, tag = 'input window, operand 0']
    #allocation4 [shape = 's32[2]{0}', space=sflag, size = 0x8, scoped, tag = 'scoped memory for tpu_custom_call.1']
    #allocation5 [shape = 's32[2]{0}', space=sflag, size = 0x8, scoped, tag = 'scoped memory for tpu_custom_call.1']
    #allocation6 [shape = 'u8[2048]{0}', space=vmem, size = 0x800, scoped, tag = 'output window, operand 0']
    %9 = vsyncpa [#allocation4], 0
    %s10 = scalar_lea.sflag [#allocation4], 1
    %11 = vsyncpa %s10, 0
    %12 = vsyncpa [#allocation5], 0
    %s13 = scalar_lea.sflag [#allocation5], 1
    %14 = vsyncpa %s13, 0
    loop: start=0, step=1, limit=4
    $region2: #{tpu_custom_call.1} parent=1 // loop_pre_header
      _
    $region3: #{tpu_custom_call.1} parent=1 // loop_header
      %s16 = sphi 0, %s20
      %p17 = scmp.ge.s32.totalorder %s16, 4
      %s23 = sphi 0, %s35
      %s24 = sphi 0, %s31
      %s25 = sphi 0, %s23
      %s26 = sphi 0, %s24
      %s27 = sphi 0, %s25
      %s28 = sphi 0, %s26
      %s40 = sphi 0, %s42
      %s43 = sphi 0, %s40
      %s44 = sphi 0, %s43
      %s60 = sphi 0, %s44
      %s64 = sphi 0, %s64
      %s66 = sphi 0, %s64
      %s67 = sphi 0, %s66
      %s81 = sphi 0, %s67
      %s85 = sphi 0, %s85
      %s87 = sphi 0, %s85
      %s88 = sphi 0, %s87
      %s102 = sphi 0, %s88
      %s110 = sphi 0, %s112
      %s113 = sphi 0, %s110
      %s114 = sphi 0, %s113
      %s130 = sphi 0, %s114
    $region4: #{tpu_custom_call.1} parent=1 // loop_header_branch
      %19 = sbr.rel (%p17) target = $region8
    $region5: #{tpu_custom_call.1} parent=1 // loop_body
      %s21 = ssub.s32 %s16, 1
      %s22 = ssub.s32 %s16, 2
      %s29 = sadd.s32 1, %s24
      %p30 = scmp.ge.s32.totalorder %s29, 1
      %s31 = scalar_select %p30, 0, %s29
      %s32 = sadd.s32 1, %s23
      %s33 = scalar_select %p30, %s32, %s23
      %p34 = scmp.ge.s32.totalorder %s33, 2
      %s35 = scalar_select %p34, 0, %s33
      %s36 = ssub.s32 %s23, %s35
      %s37 = ssub.s32 %s24, %s31
      %s38 = sor.u32 %s36, %s37
      %p39 = scmp.eq.s32.totalorder %s38, 0
      %s41 = sadd.s32 %s40, 1
      %s42 = scalar_select %p39, %s40, %s41
      %p45 = pneg %p39
      %p46 = scmp.eq.s32.totalorder %s16, 1
      %p47 = por %p45, %p46
      %p48 = scmp.ne.s32.totalorder %s40, %s43
      %p49 = scmp.eq.s32.totalorder %s16, 0
      %p50 = por %p48, %p49
      %p51 = scmp.ne.s32.totalorder %s40, %s43
      %p52 = scmp.eq.s32.totalorder %s21, 1
      %p53 = por %p51, %p52
      %p54 = scmp.ne.s32.totalorder %s43, %s44
      %p55 = scmp.eq.s32.totalorder %s21, 0
      %p56 = por %p54, %p55
      %p57 = scmp.ne.s32.totalorder %s43, %s44
      %p58 = scmp.eq.s32.totalorder %s22, 1
      %p59 = por %p57, %p58
      %p61 = scmp.ne.s32.totalorder %s44, %s60
      %p62 = scmp.eq.s32.totalorder %s22, 0
      %p63 = por %p61, %p62
      %s65 = sadd.s32 %s64, 1
      %p68 = scmp.eq.s32.totalorder %s16, 1
      %p69 = scmp.ne.s32.totalorder %s64, %s66
      %p70 = scmp.eq.s32.totalorder %s16, 0
      %p71 = por %p69, %p70
      %p72 = scmp.ne.s32.totalorder %s64, %s66
      %p73 = scmp.eq.s32.totalorder %s21, 1
      %p74 = por %p72, %p73
      %p75 = scmp.ne.s32.totalorder %s66, %s67
      %p76 = scmp.eq.s32.totalorder %s21, 0
      %p77 = por %p75, %p76
      %p78 = scmp.ne.s32.totalorder %s66, %s67
      %p79 = scmp.eq.s32.totalorder %s22, 1
      %p80 = por %p78, %p79
      %p82 = scmp.ne.s32.totalorder %s67, %s81
      %p83 = scmp.eq.s32.totalorder %s22, 0
      %p84 = por %p82, %p83
      %s86 = sadd.s32 %s85, 1
      %p89 = scmp.eq.s32.totalorder %s16, 1
      %p90 = scmp.ne.s32.totalorder %s85, %s87
      %p91 = scmp.eq.s32.totalorder %s16, 0
      %p92 = por %p90, %p91
      %p93 = scmp.ne.s32.totalorder %s85, %s87
      %p94 = scmp.eq.s32.totalorder %s21, 1
      %p95 = por %p93, %p94
      %p96 = scmp.ne.s32.totalorder %s87, %s88
      %p97 = scmp.eq.s32.totalorder %s21, 0
      %p98 = por %p96, %p97
      %p99 = scmp.ne.s32.totalorder %s87, %s88
      %p100 = scmp.eq.s32.totalorder %s22, 1
      %p101 = por %p99, %p100
      %p103 = scmp.ne.s32.totalorder %s88, %s102
      %p104 = scmp.eq.s32.totalorder %s22, 0
      %p105 = por %p103, %p104
      %s106 = ssub.s32 %s23, %s35
      %s107 = ssub.s32 %s24, %s31
      %s108 = sor.u32 %s106, %s107
      %p109 = scmp.eq.s32.totalorder %s108, 0
      %s111 = sadd.s32 %s110, 1
      %s112 = scalar_select %p109, %s110, %s111
      %p115 = pneg %p109
      %p116 = scmp.eq.s32.totalorder %s16, 1
      %p117 = por %p115, %p116
      %p118 = scmp.ne.s32.totalorder %s110, %s113
      %p119 = scmp.eq.s32.totalorder %s16, 0
      %p120 = por %p118, %p119
      %p121 = scmp.ne.s32.totalorder %s110, %s113
      %p122 = scmp.eq.s32.totalorder %s21, 1
      %p123 = por %p121, %p122
      %p124 = scmp.ne.s32.totalorder %s113, %s114
      %p125 = scmp.eq.s32.totalorder %s21, 0
      %p126 = por %p124, %p125
      %p127 = scmp.ne.s32.totalorder %s113, %s114
      %p128 = scmp.eq.s32.totalorder %s22, 1
      %p129 = por %p127, %p128
      %p131 = scmp.ne.s32.totalorder %s114, %s130
      %p132 = scmp.eq.s32.totalorder %s22, 0
      %p133 = por %p131, %p132
      %p134 = scmp.le.s32.totalorder 1, %s16
      %p135 = scmp.lt.s32.totalorder %s16, 3
      %p136 = pnand %p134, %p135
      %p137 = pneg %p136
      // Predicated region
      $region9: #{tpu_custom_call.1} parent=5 // pred_check
        _
      $region10: #{tpu_custom_call.1} parent=5 // pred_check_branch
        %139 = sbr.rel (%p136) target = $region12
      $region11: #{tpu_custom_call.1} parent=5 // pred_region
        %s140 = ssub.s32 %s16, 1
        // Predicated region
        $region13: #{tpu_custom_call.1} parent=11 // pred_check
          %p141 = pneg %p77
        $region14: #{tpu_custom_call.1} parent=11 // pred_check_branch
          %143 = sbr.rel (%p141) target = $region16
        $region15: #{tpu_custom_call.1} parent=11 // pred_region
          _
        $region16: #{tpu_custom_call.1} parent=11 // pred_fallthru
          _
        // Predicated region
        $region17: #{tpu_custom_call.1} parent=11 // pred_check
          %p144 = pneg %p98
        $region18: #{tpu_custom_call.1} parent=11 // pred_check_branch
          %146 = sbr.rel (%p144) target = $region20
        $region19: #{tpu_custom_call.1} parent=11 // pred_region
          _
        $region20: #{tpu_custom_call.1} parent=11 // pred_fallthru
          _
      $region12: #{tpu_custom_call.1} parent=5 // pred_fallthru
        _
      %p147 = scmp.lt.s32.totalorder %s16, 2
      // Predicated region
      $region21: #{tpu_custom_call.1} parent=5 // pred_check
        %p148 = pneg %p147
      $region22: #{tpu_custom_call.1} parent=5 // pred_check_branch
        %150 = sbr.rel (%p148) target = $region24
      $region23: #{tpu_custom_call.1} parent=5 // pred_region
        // Predicated region
        $region25: #{tpu_custom_call.1} parent=23 // pred_check
          %p151 = pneg %p50
        $region26: #{tpu_custom_call.1} parent=23 // pred_check_branch
          %153 = sbr.rel (%p151) target = $region28
        $region27: #{tpu_custom_call.1} parent=23 // pred_region
          %s154 = sand.u32 %s40, 1
          %s155 = scalar_lea.sflag [#allocation4], %s154
          %s156 = sand.u32 %s40, 1
          %s157 = smul.addr %s156, 512
          %s158 = scalar_lea.vmem [#allocation3], %s157
          %s159 = smul.u32 2, %s24
          %s161 = ssub.s32 8192, 8192
          %162 = vsyncadd %s155, %s161
          %s163 = smul.addr %s23, 64
          %s164 = sadd.s32 %s159, %s163
          %s165 = smul.addr %s164, 128
          %s166 = scalar_lea.hbm %s0, %s165
          %s167 = sshll.u32 %s158, 4
          %s168 = int_to_ptr.vmem [resolvable:$true] %s167
          %173 = dma.hbm_to_vmem [thread:$0]  %s166, 8192, %s168, %s155, 256, 256, 16
        $region28: #{tpu_custom_call.1} parent=23 // pred_fallthru
          _
      $region24: #{tpu_custom_call.1} parent=5 // pred_fallthru
        _
      %p174 = scmp.le.s32.totalorder 1, %s16
      %p175 = scmp.lt.s32.totalorder %s16, 3
      %p176 = pnand %p174, %p175
      %p177 = pneg %p176
      // Predicated region
      $region29: #{tpu_custom_call.1} parent=5 // pred_check
        _
      $region30: #{tpu_custom_call.1} parent=5 // pred_check_branch
        %179 = sbr.rel (%p176) target = $region32
      $region31: #{tpu_custom_call.1} parent=5 // pred_region
        %s180 = ssub.s32 %s16, 1
        %s181 = sand.u32 %s43, 1
        %s182 = scalar_lea.sflag [#allocation4], %s181
        %s183 = sand.u32 %s43, 1
        %s184 = smul.addr %s183, 512
        %s185 = scalar_lea.vmem [#allocation3], %s184
        // Predicated region
        $region33: #{tpu_custom_call.1} parent=31 // pred_check
          %p186 = pneg %p56
        $region34: #{tpu_custom_call.1} parent=31 // pred_check_branch
          %188 = sbr.rel (%p186) target = $region36
        $region35: #{tpu_custom_call.1} parent=31 // pred_region
          %189 = dma.done %s182, 8192
        $region36: #{tpu_custom_call.1} parent=31 // pred_fallthru
          _
        %s190 = sand.u32 %s43, 1
        %s191 = scalar_lea.sflag [#allocation4], %s190
        %s192 = sand.u32 %s43, 1
        %s193 = smul.addr %s192, 512
        %s194 = scalar_lea.vmem [#allocation3], %s193
        %p195 = pneg %p56
        %p196 = pneg %p53
        %p197 = pneg %p77
        %p198 = pneg %p74
        %p199 = pneg %p98
        %p200 = pneg %p95
        %p201 = pneg %p126
        %p202 = pneg %p123
        %s203 = sand.u32 %s113, 1
        %s204 = scalar_lea.sflag [#allocation5], %s203
        %s205 = sand.u32 %s113, 1
        %s206 = smul.addr %s205, 2
        %s207 = scalar_lea.vmem [#allocation6], %s206
        %s208 = smul.u32 2, %s26
        %s209 = smul.u32 2, %s26
        %v210 = vld [vmem:[%s1] sm:$0x3]
        %v211 = vld [vmem:[%s185] sm:$0xff]
        %v212 = vld [vmem:[%s185 + $0x8] sm:$0xff]
        %v213 = vld [vmem:[%s185 + $0x10] sm:$0xff]
        %v214 = vld [vmem:[%s185 + $0x18] sm:$0xff]
        %v215 = vld [vmem:[%s185 + $0x20] sm:$0xff]
        %v216 = vld [vmem:[%s185 + $0x28] sm:$0xff]
        %v217 = vld [vmem:[%s185 + $0x30] sm:$0xff]
        %v218 = vld [vmem:[%s185 + $0x38] sm:$0xff]
        %v219 = vld [vmem:[%s185 + $0x40] sm:$0xff]
        %v220 = vld [vmem:[%s185 + $0x48] sm:$0xff]
        %v221 = vld [vmem:[%s185 + $0x50] sm:$0xff]
        %v222 = vld [vmem:[%s185 + $0x58] sm:$0xff]
        %v223 = vld [vmem:[%s185 + $0x60] sm:$0xff]
        %v224 = vld [vmem:[%s185 + $0x68] sm:$0xff]
        %v225 = vld [vmem:[%s185 + $0x70] sm:$0xff]
        %v226 = vld [vmem:[%s185 + $0x78] sm:$0xff]
        %v227 = vld [vmem:[%s185 + $0x80] sm:$0xff]
        %v228 = vld [vmem:[%s185 + $0x88] sm:$0xff]
        %v229 = vld [vmem:[%s185 + $0x90] sm:$0xff]
        %v230 = vld [vmem:[%s185 + $0x98] sm:$0xff]
        %v231 = vld [vmem:[%s185 + $0xa0] sm:$0xff]
        %v232 = vld [vmem:[%s185 + $0xa8] sm:$0xff]
        %v233 = vld [vmem:[%s185 + $0xb0] sm:$0xff]
        %v234 = vld [vmem:[%s185 + $0xb8] sm:$0xff]
        %v235 = vld [vmem:[%s185 + $0xc0] sm:$0xff]
        %v236 = vld [vmem:[%s185 + $0xc8] sm:$0xff]
        %v237 = vld [vmem:[%s185 + $0xd0] sm:$0xff]
        %v238 = vld [vmem:[%s185 + $0xd8] sm:$0xff]
        %v239 = vld [vmem:[%s185 + $0xe0] sm:$0xff]
        %v240 = vld [vmem:[%s185 + $0xe8] sm:$0xff]
        %v241 = vld [vmem:[%s185 + $0xf0] sm:$0xff]
        %v242 = vld [vmem:[%s185 + $0xf8] sm:$0xff]
        %v243 = vld [vmem:[%s185 + $0x100] sm:$0xff]
        %v244 = vld [vmem:[%s185 + $0x108] sm:$0xff]
        %v245 = vld [vmem:[%s185 + $0x110] sm:$0xff]
        %v246 = vld [vmem:[%s185 + $0x118] sm:$0xff]
        %v247 = vld [vmem:[%s185 + $0x120] sm:$0xff]
        %v248 = vld [vmem:[%s185 + $0x128] sm:$0xff]
        %v249 = vld [vmem:[%s185 + $0x130] sm:$0xff]
        %v250 = vld [vmem:[%s185 + $0x138] sm:$0xff]
        %v251 = vld [vmem:[%s185 + $0x140] sm:$0xff]
        %v252 = vld [vmem:[%s185 + $0x148] sm:$0xff]
        %v253 = vld [vmem:[%s185 + $0x150] sm:$0xff]
        %v254 = vld [vmem:[%s185 + $0x158] sm:$0xff]
        %v255 = vld [vmem:[%s185 + $0x160] sm:$0xff]
        %v256 = vld [vmem:[%s185 + $0x168] sm:$0xff]
        %v257 = vld [vmem:[%s185 + $0x170] sm:$0xff]
        %v258 = vld [vmem:[%s185 + $0x178] sm:$0xff]
        %v259 = vld [vmem:[%s185 + $0x180] sm:$0xff]
        %v260 = vld [vmem:[%s185 + $0x188] sm:$0xff]
        %v261 = vld [vmem:[%s185 + $0x190] sm:$0xff]
        %v262 = vld [vmem:[%s185 + $0x198] sm:$0xff]
        %v263 = vld [vmem:[%s185 + $0x1a0] sm:$0xff]
        %v264 = vld [vmem:[%s185 + $0x1a8] sm:$0xff]
        %v265 = vld [vmem:[%s185 + $0x1b0] sm:$0xff]
        %v266 = vld [vmem:[%s185 + $0x1b8] sm:$0xff]
        %v267 = vld [vmem:[%s185 + $0x1c0] sm:$0xff]
        %v268 = vld [vmem:[%s185 + $0x1c8] sm:$0xff]
        %v269 = vld [vmem:[%s185 + $0x1d0] sm:$0xff]
        %v270 = vld [vmem:[%s185 + $0x1d8] sm:$0xff]
        %v271 = vld [vmem:[%s185 + $0x1e0] sm:$0xff]
        %v272 = vld [vmem:[%s185 + $0x1e8] sm:$0xff]
        %v273 = vld [vmem:[%s185 + $0x1f0] sm:$0xff]
        %v274 = vld [vmem:[%s185 + $0x1f8] sm:$0xff]
        %s275 = sld [smem:[#allocation2]]
        %v276 = vstv %s275
        %v278 = vlaneseq
        %v279 = vshrl.u32 %v278, 7
        %v280 = vsub.s32 0, %v279
        %v281 = vrot.slane %v210, %v280
        %v282 = vlaneseq
        %v283 = vshrl.u32 %v282, 7
        %v284 = vsub.s32 1, %v283
        %v285 = vrot.slane %v210, %v284
        %288 = vmatprep.subr.mxu0 %v212
        %289 = vmatpush1.msra.mxu0 %v211
        %290 = vmatprep.subr.mxu0 %v214
        %291 = vmatpush1.msra.mxu0 %v213
        %292 = vmatprep.subr.mxu0 %v216
        %293 = vmatpush1.msra.mxu0 %v215
        %294 = vmatprep.subr.mxu0 %v218
        %295 = vmatpush1.msra.mxu0 %v217
        %296 = vmatprep.subr.mxu0 %v220
        %297 = vmatpush1.msra.mxu0 %v219
        %298 = vmatprep.subr.mxu0 %v222
        %299 = vmatpush1.msra.mxu0 %v221
        %300 = vmatprep.subr.mxu0 %v224
        %301 = vmatpush1.msra.mxu0 %v223
        %302 = vmatprep.subr.mxu0 %v226
        %303 = vmatpush1.msra.mxu0 %v225
        %304 = vmatprep.subr.mxu0 %v228
        %305 = vmatpush1.msra.mxu0 %v227
        %306 = vmatprep.subr.mxu0 %v230
        %307 = vmatpush1.msra.mxu0 %v229
        %308 = vmatprep.subr.mxu0 %v232
        %309 = vmatpush1.msra.mxu0 %v231
        %310 = vmatprep.subr.mxu0 %v234
        %311 = vmatpush1.msra.mxu0 %v233
        %312 = vmatprep.subr.mxu0 %v236
        %313 = vmatpush1.msra.mxu0 %v235
        %314 = vmatprep.subr.mxu0 %v238
        %315 = vmatpush1.msra.mxu0 %v237
        %316 = vmatprep.subr.mxu0 %v240
        %317 = vmatpush1.msra.mxu0 %v239
        %318 = vmatprep.subr.mxu0 %v242
        %319 = vmatpush1.msra.mxu0 %v241
        %320 = vmatprep.subr.mxu0 %v244
        %321 = vmatpush1.msra.mxu0 %v243
        %322 = vmatprep.subr.mxu0 %v246
        %323 = vmatpush1.msra.mxu0 %v245
        %324 = vmatprep.subr.mxu0 %v248
        %325 = vmatpush1.msra.mxu0 %v247
        %326 = vmatprep.subr.mxu0 %v250
        %327 = vmatpush1.msra.mxu0 %v249
        %328 = vmatprep.subr.mxu0 %v252
        %329 = vmatpush1.msra.mxu0 %v251
        %330 = vmatprep.subr.mxu0 %v254
        %331 = vmatpush1.msra.mxu0 %v253
        %332 = vmatprep.subr.mxu0 %v256
        %333 = vmatpush1.msra.mxu0 %v255
        %334 = vmatprep.subr.mxu0 %v258
        %335 = vmatpush1.msra.mxu0 %v257
        %336 = vmatprep.subr.mxu0 %v260
        %337 = vmatpush1.msra.mxu0 %v259
        %338 = vmatprep.subr.mxu0 %v262
        %339 = vmatpush1.msra.mxu0 %v261
        %340 = vmatprep.subr.mxu0 %v264
        %341 = vmatpush1.msra.mxu0 %v263
        %342 = vmatprep.subr.mxu0 %v266
        %343 = vmatpush1.msra.mxu0 %v265
        %344 = vmatprep.subr.mxu0 %v268
        %345 = vmatpush1.msra.mxu0 %v267
        %346 = vmatprep.subr.mxu0 %v270
        %347 = vmatpush1.msra.mxu0 %v269
        %348 = vmatprep.subr.mxu0 %v272
        %349 = vmatpush1.msra.mxu0 %v271
        %350 = vmatprep.subr.mxu0 %v274
        %351 = vmatpush1.msra.mxu0 %v273
        %352 = vmatprep.mubr.f32.mxu0 %v285
        %353 = vmatmul.mubr.f32.gmra.mrb[0].mxu0 %v281
        %v354 = vpop.f32.mrb[0].mxu0
        %v355 = vadd.f32 %v276, %v354
        %v356 = vpop.f32.mrb[0].mxu0
        %v357 = vadd.f32 %v276, %v356
        %358 = vdwg.mxu0
        %v359 = vxor.u32 %v355, 2147483648
        %v360 = vxor.u32 %v357, 2147483648
        %v361 = vmul.f32 %v359, 1.442695
        %v362 = vpow.pop %v361
        %v363 = vmul.f32 %v360, 1.442695
        %v364 = vpow.pop %v363
        %v365 = vadd.f32 %v362, 1.0
        %v366 = vadd.f32 %v364, 1.0
        %v367 = vrcp.pop %v365
        %v368 = vmul.f32 1.0, %v367
        %v369 = vrcp.pop %v366
        %v370 = vmul.f32 1.0, %v369
        %v373 = vcombine.low %v368, %v370
        %v375 = vunpack.c.l.s4 1966171168
        %v376 = vunpack.c.0.s8 %v375
        %v377 = vlaneseq
        %v378 = vshrl.u32 %v377, 7
        %v379 = vsub.s32 %v376, %v378
        %v380 = vrot.slane %v373, %v379
        %v382 = vunpack.c.l.s4 1966171168
        %v383 = vunpack.c.0.s8 %v382
        %v384 = vlaneseq
        %v385 = vshrl.u32 %v384, 7
        %v386 = vsub.s32 %v383, %v385
        %v387 = vrot.slane %v380, %v386
        %v389 = vlaneseq
        %vm390 = vcmp.ge.s32.totalorder %v389, 0
        %vm391 = vcmp.lt.s32.totalorder %v389, 256
        %vm392 = vmand %vm390, %vm391
        %393 = vst.msk [vmem:[%s207] sm:$0x3] %vm392, %v387
        %s394 = sand.u32 %s113, 1
        %s395 = scalar_lea.sflag [#allocation5], %s394
        %s396 = sand.u32 %s113, 1
        %s397 = smul.addr %s396, 2
        %s398 = scalar_lea.vmem [#allocation6], %s397
        // Predicated region
        $region37: #{tpu_custom_call.1} parent=31 // pred_check
          %p399 = pneg %p123
        $region38: #{tpu_custom_call.1} parent=31 // pred_check_branch
          %401 = sbr.rel (%p399) target = $region40
        $region39: #{tpu_custom_call.1} parent=31 // pred_region
          %s402 = smul.u32 2, %s26
          %s404 = ssub.s32 32, 32
          %405 = vsyncadd %s395, %s404
          %s406 = smul.addr %s25, 2
          %s407 = sadd.s32 %s402, %s406
          %s408 = smul.addr %s407, 16
          %s409 = scalar_lea.hbm %s3, %s408
          %s411 = sshll.u32 %s398, 4
          %s412 = int_to_ptr.vmem [resolvable:$true] %s411
          %414 = dma.vmem_to_hbm [thread:$0]  %s412, 32, %s409, %s395
        $region40: #{tpu_custom_call.1} parent=31 // pred_fallthru
          _
      $region32: #{tpu_custom_call.1} parent=5 // pred_fallthru
        _
      %p415 = scmp.le.s32.totalorder 2, %s16
      // Predicated region
      $region41: #{tpu_custom_call.1} parent=5 // pred_check
        %p416 = pneg %p415
      $region42: #{tpu_custom_call.1} parent=5 // pred_check_branch
        %418 = sbr.rel (%p416) target = $region44
      $region43: #{tpu_custom_call.1} parent=5 // pred_region
        %s419 = ssub.s32 %s16, 2
        // Predicated region
        $region45: #{tpu_custom_call.1} parent=43 // pred_check
          %p420 = pneg %p129
        $region46: #{tpu_custom_call.1} parent=43 // pred_check_branch
          %422 = sbr.rel (%p420) target = $region48
        $region47: #{tpu_custom_call.1} parent=43 // pred_region
          %s423 = sand.u32 %s114, 1
          %s424 = scalar_lea.sflag [#allocation5], %s423
          %s425 = sand.u32 %s114, 1
          %s426 = smul.addr %s425, 2
          %s427 = scalar_lea.vmem [#allocation6], %s426
          %428 = dma.done %s424, 32
        $region48: #{tpu_custom_call.1} parent=43 // pred_fallthru
          _
      $region44: #{tpu_custom_call.1} parent=5 // pred_fallthru
        _
    $region6: #{tpu_custom_call.1} parent=1 // loop_footer
      %s20 = sadd.s32 1, %s16
    $region7: #{tpu_custom_call.1} parent=1 // loop_footer_branch
      %15 = sbr.rel target = $region3
    $region8: #{tpu_custom_call.1} parent=1 // loop_exit
      _
    %429 = vsyncpa [#allocation4], 1
    %s430 = scalar_lea.sflag [#allocation4], 1
    %431 = vsyncpa %s430, 1
    %432 = vsyncpa [#allocation5], 1
    %s433 = scalar_lea.sflag [#allocation5], 1
    %434 = vsyncpa %s433, 1

</llo_original>
